<compile_context>
chip_gen: v6e
topology: v6e:2x2x1
jax: 0.10.0
libtpu: 0.0.40
codegen_flags: <defaults>
</compile_context>

<pallas_src>
import functools

import jax
import jax.numpy as jnp
from jax.experimental import pallas as pl
from jax.experimental.pallas import tpu as pltpu


def _round_up(x, m):
    return ((x + m - 1) // m) * m


def _cdiv(a, b):
    return (a + b - 1) // b


def _sublane(itemsize):
    # rows per vreg sublane group for this dtype width
    return {4: 8, 2: 16, 1: 32}.get(itemsize, 8)


def _di_kernel(x_ref, w_ref, b_ref, o_ref, pooled_ref, *, inv_s):
    # x_ref:      (TN, C, S)   activations in native (N, C, H*W) layout
    # w_ref:      (C, TK)      classifier weight tile (original dtype, un-scaled)
    # b_ref:      (1, TK) f32  bias tile
    # o_ref:      (TN, TK)     logits tile
    # pooled_ref: (TN, C) f32  scratch: global-average-pooled features
    @pl.when(pl.program_id(1) == 0)
    def _():
        # Global average pool: lane-axis sum (XLU) with f32 accumulation,
        # scaled by 1/S in-kernel so the classifier weight keeps its exact bits.
        pooled_ref[...] = jnp.sum(x_ref[...], axis=-1, dtype=jnp.float32) * inv_s

    w = w_ref[...]
    p = pooled_ref[...].astype(w.dtype)
    logits = jnp.dot(p, w, preferred_element_type=jnp.float32)
    o_ref[...] = (logits + b_ref[...]).astype(o_ref.dtype)


def di_forward(x_nchw, weight, bias):
    """x_nchw: (N, C, H, W); weight: (num_classes, C) [PyTorch]; bias: (num_classes,)."""
    N, C, H, W = x_nchw.shape
    num_classes = weight.shape[0]
    S = H * W

    # --- wrapper glue: free, contiguous reshape (no HBM transpose pass) ---
    x_ncs = x_nchw.reshape(N, C, S)

    x_item = jnp.dtype(x_ncs.dtype).itemsize
    w_item = jnp.dtype(weight.dtype).itemsize
    out_dtype = x_nchw.dtype
    out_item = jnp.dtype(out_dtype).itemsize

    # --- per-generation VMEM capacity ---
    try:
        vmem_cap = int(pltpu.get_tpu_info().vmem_capacity_bytes)
    except Exception:
        vmem_cap = 64 << 20                      # conservative (v7x per-core)
    vmem_limit_cap = (vmem_cap * 3) // 4         # ~96 MiB v5e/v6e, ~48 MiB v7x
    two_tc_likely = vmem_cap <= (64 << 20)       # v7x: 2 TensorCores / chip

    lane = 128
    x_sub = _sublane(x_item)
    out_sub = _sublane(out_item)
    w_sub = _sublane(w_item)
    sub = max(x_sub, out_sub)

    # --- class (lane) tiling: tk multiple of 128 and tk | k_pad guaranteed ---
    k_min = _round_up(max(num_classes, 1), lane)
    w_row_bytes = _round_up(C, w_sub) * w_item
    w_budget = vmem_limit_cap // 6               # per weight buffer (double-buffered)
    tk_max = max(lane, (w_budget // max(w_row_bytes, 1)) // lane * lane)
    if tk_max >= k_min:
        tk, k_pad = k_min, k_min                 # single class tile: weight DMA'd once
    else:
        tk = tk_max
        k_pad = _round_up(k_min, tk)             # ensures tk | k_pad
        # TODO(synk): for huge num_classes with many batch tiles the weight is
        # re-streamed once per batch tile; a two-pass (pool, then matmul)
        # variant would fetch it only once.

    # --- batch (sublane) tiling from the lane/sublane-padded footprint ---
    x_row_bytes = _round_up(C, x_sub) * _round_up(S, lane) * x_item
    x_budget = vmem_limit_cap // 6               # per x buffer (double-buffered)
    tn = max(sub, min(x_budget // max(x_row_bytes, 1), 512))
    tn = max(sub, (tn // sub) * sub)
    if two_tc_likely and N >= 2 * sub:
        # keep >= 2 tiles on the "parallel" batch axis so both v7x cores work
        tn = min(tn, _round_up(_cdiv(N, 2), sub))
    # TODO(synk): if a single batch row (C*S) alone exceeds the VMEM budget the
    # spatial axis would also need tiling; not needed for realistic Di shapes.

    w_block = _round_up(C, w_sub) * tk * w_item
    b_block = 8 * tk * 4

    def _vmem_need(tn_):
        x_block = tn_ * x_row_bytes
        o_block = _round_up(tn_, out_sub) * tk * out_item
        pooled_block = _round_up(tn_, 8) * _round_up(C, lane) * 4
        return (2 * x_block + 2 * w_block + 2 * b_block + 2 * o_block
                + pooled_block + (2 << 20))

    while tn > sub and _vmem_need(tn) > vmem_limit_cap:
        tn = max(sub, ((tn // 2) // sub) * sub)

    if tn >= N:
        tn = N                                   # single exact tile (block == full dim)

    grid = (_cdiv(N, tn), k_pad // tk)           # no batch padding: ragged last tile

    # --- lane-pad classes only (weight bits untouched otherwise) ---
    w_t = weight.T                               # (C, K)
    if k_pad != num_classes:
        w_p = jnp.zeros((C, k_pad), dtype=weight.dtype).at[:, :num_classes].set(w_t)
        b_p = jnp.zeros((1, k_pad), dtype=jnp.float32).at[0, :num_classes].set(
            bias.astype(jnp.float32))
    else:
        w_p = w_t
        b_p = bias.astype(jnp.float32).reshape(1, k_pad)

    vmem_limit = int(min(max(_vmem_need(tn), 16 << 20), vmem_limit_cap))

    cost = pl.CostEstimate(
        flops=2 * N * C * k_pad,
        transcendentals=0,
        bytes_accessed=(N * C * S * x_item + C * k_pad * w_item
                        + N * k_pad * out_item),
    )

    out = pl.pallas_call(
        functools.partial(_di_kernel, inv_s=float(1.0 / S)),
        out_shape=jax.ShapeDtypeStruct((N, k_pad), out_dtype),
        grid=grid,
        in_specs=[
            pl.BlockSpec((tn, C, S), lambda i, k: (i, 0, 0)),
            pl.BlockSpec((C, tk), lambda i, k: (0, k)),
            pl.BlockSpec((1, tk), lambda i, k: (0, k)),
        ],
        out_specs=pl.BlockSpec((tn, tk), lambda i, k: (i, k)),
        scratch_shapes=[pltpu.VMEM((tn, C), jnp.float32)],
        compiler_params=pltpu.CompilerParams(
            dimension_semantics=("parallel", "arbitrary"),
            vmem_limit_bytes=vmem_limit),
        cost_estimate=cost,
    )(x_ncs, w_p, b_p)

    return out[:, :num_classes]


if __name__ == "__main__":
    key = jax.random.PRNGKey(0)

    # Case 1: small, module-consistent shapes.
    #   Di(num_features=32, num_classes=16), input (N=2, C=32, H=8, W=8)
    N, C, H, W = 2, 32, 8, 8
    num_classes = 16
    kx, kw, k2x, k2w = jax.random.split(key, 4)

    x = jax.random.normal(kx, (N, C, H, W), dtype=jnp.float32)
    # init.normal(std=0.001) for classifier weight, constant 0 for bias
    weight = 0.001 * jax.random.normal(kw, (num_classes, C), dtype=jnp.float32)
    bias = jnp.zeros((num_classes,), dtype=jnp.float32)

    out = di_forward(x, weight, bias)
    jax.block_until_ready(out)
    ref = jnp.mean(x, axis=(2, 3)) @ weight.T + bias
    assert out.shape == (N, num_classes)
    assert jnp.allclose(out, ref, atol=1e-5, rtol=1e-4)

    # Case 2: ragged batch / non-multiple-of-128 class count.
    N2, C2, H2, W2, K2 = 10, 16, 4, 4, 200
    x2 = jax.random.normal(k2x, (N2, C2, H2, W2), dtype=jnp.float32)
    w2 = 0.001 * jax.random.normal(k2w, (K2, C2), dtype=jnp.float32)
    b2 = jnp.zeros((K2,), dtype=jnp.float32)

    out2 = di_forward(x2, w2, b2)
    jax.block_until_ready(out2)
    ref2 = jnp.mean(x2, axis=(2, 3)) @ w2.T + b2
    assert out2.shape == (N2, K2)
    assert jnp.allclose(out2, ref2, atol=1e-5, rtol=1e-4)

    print("KERNEL_OK")
</pallas_src>

<mosaic_0001>
module attributes {stable_mosaic.version = 11 : i64} {
  func.func @_di_kernel(%arg0: i32, %arg1: i32, %arg2: memref<2x32x64xf32, #tpu.memory_space<vmem>>, %arg3: memref<32x128xf32, #tpu.memory_space<vmem>>, %arg4: memref<1x128xf32, #tpu.memory_space<vmem>>, %arg5: memref<2x128xf32, #tpu.memory_space<vmem>>, %arg6: memref<2x32xf32, #tpu.memory_space<vmem>>) attributes {dimension_semantics = [#tpu.dimension_semantics<parallel>, #tpu.dimension_semantics<arbitrary>], iteration_bounds = array<i64: 1, 1>, scalar_prefetch = 0 : i64, scratch_operands = 1 : i64, tpu.core_type = #tpu.core_type<tc>, window_params = [{transform_indices = @transform_0, window_bounds = array<i64: 2, 32, 64>}, {transform_indices = @transform_1, window_bounds = array<i64: 32, 128>}, {transform_indices = @transform_2, window_bounds = array<i64: 1, 128>}, {transform_indices = @transform_3, window_bounds = array<i64: 2, 128>}]} {
    %c0_i32 = arith.constant 0 : i32
    %0 = arith.cmpi eq, %arg1, %c0_i32 : i32
    %1 = arith.extui %0 : i1 to i32
    %c0_i32_0 = arith.constant 0 : i32
    %2 = arith.cmpi ne, %1, %c0_i32_0 : i32
    scf.if %2 {
      %c0_8 = arith.constant 0 : index
      %c0_9 = arith.constant 0 : index
      %c0_10 = arith.constant 0 : index
      %10 = vector.load %arg2[%c0_8, %c0_9, %c0_10] : memref<2x32x64xf32, #tpu.memory_space<vmem>>, vector<2x32x64xf32>
      %cst_11 = arith.constant dense<0.000000e+00> : vector<2x32xf32>
      %11 = vector.multi_reduction <add>, %10, %cst_11 [2] : vector<2x32x64xf32> to vector<2x32xf32>
      %cst_12 = arith.constant 1.562500e-02 : f32
      %12 = vector.broadcast %cst_12 : f32 to vector<2x32xf32>
      %13 = arith.mulf %11, %12 : vector<2x32xf32>
      %c0_13 = arith.constant 0 : index
      %c0_14 = arith.constant 0 : index
      %14 = vector.load %arg6[%c0_13, %c0_14] : memref<2x32xf32, #tpu.memory_space<vmem>>, vector<2x32xf32>
      tpu.vector_store %arg6[%c0_13, %c0_14], %13 {strides = array<i32>} : memref<2x32xf32, #tpu.memory_space<vmem>>, vector<2x32xf32>,
    } else {
    }
    %c0 = arith.constant 0 : index
    %c0_1 = arith.constant 0 : index
    %3 = vector.load %arg3[%c0, %c0_1] : memref<32x128xf32, #tpu.memory_space<vmem>>, vector<32x128xf32>
    %c0_2 = arith.constant 0 : index
    %c0_3 = arith.constant 0 : index
    %4 = vector.load %arg6[%c0_2, %c0_3] : memref<2x32xf32, #tpu.memory_space<vmem>>, vector<2x32xf32>
    %cst = arith.constant dense<0.000000e+00> : vector<2x128xf32>
    %5 = tpu.matmul %4, %3, %cst {dimension_numbers = #tpu.dot_dimension_numbers<[1], [0], [0], [1], [0, 0, 1, 1], [], []>} : vector<2x32xf32>, vector<32x128xf32>, vector<2x128xf32> -> vector<2x128xf32>
    %c0_4 = arith.constant 0 : index
    %c0_5 = arith.constant 0 : index
    %6 = vector.load %arg4[%c0_4, %c0_5] : memref<1x128xf32, #tpu.memory_space<vmem>>, vector<1x128xf32>
    %7 = vector.broadcast %6 : vector<1x128xf32> to vector<2x128xf32>
    %8 = arith.addf %5, %7 : vector<2x128xf32>
    %c0_6 = arith.constant 0 : index
    %c0_7 = arith.constant 0 : index
    %9 = vector.load %arg5[%c0_6, %c0_7] : memref<2x128xf32, #tpu.memory_space<vmem>>, vector<2x128xf32>
    tpu.vector_store %arg5[%c0_6, %c0_7], %8 {strides = array<i32>} : memref<2x128xf32, #tpu.memory_space<vmem>>, vector<2x128xf32>,
    return
  }
  func.func @transform_0(%arg0: i32, %arg1: i32) -> (i32, i32, i32) {
    %c0_i32 = arith.constant 0 : i32
    %c0_i32_0 = arith.constant 0 : i32
    %c0_i32_1 = arith.constant 0 : i32
    return %arg0, %c0_i32, %c0_i32_0 : i32, i32, i32
  }
  func.func @transform_1(%arg0: i32, %arg1: i32) -> (i32, i32) {
    %c0_i32 = arith.constant 0 : i32
    %c0_i32_0 = arith.constant 0 : i32
    return %c0_i32, %arg1 : i32, i32
  }
  func.func @transform_2(%arg0: i32, %arg1: i32) -> (i32, i32) {
    %c0_i32 = arith.constant 0 : i32
    %c0_i32_0 = arith.constant 0 : i32
    return %c0_i32, %arg1 : i32, i32
  }
  func.func @transform_3(%arg0: i32, %arg1: i32) -> (i32, i32) {
    %c0_i32 = arith.constant 0 : i32
    return %arg0, %arg1 : i32, i32
  }
}

</mosaic_0001>

<llo_original>
// kernel: tpu_custom_call.1
$region0: #{tpu_custom_call.1}
  #allocation0 [shape = 'u32[]', space=smem, size = 0x4, offset = 0x4, fixed_abs, tag = 'smem constant byte address 0x4 - core index']
  #allocation1 [shape = 'u32[144,128]{1,0:T(1,128)}', space=vmem, size = 0x12000, scoped, tag = 'internal scratch']
  #allocation2 [shape = 'f32[2,32]{1,0:T(2,128)}', space=vmem, size = 0x400, scoped, tag = 'scratch operand']
  %s0 = inlined_call_operand.hbm [shape: f32[2,32,64], index: 0, kind: input, shape index: {}]
  %s1 = inlined_call_operand.hbm [shape: f32[32,128], index: 1, kind: input, shape index: {}]
  %s2 = inlined_call_operand.vmem [shape: f32[1,128], index: 2, kind: input, shape index: {}]
  %s3 = inlined_call_operand.hbm [shape: f32[2,128], index: 3, kind: output, shape index: {}]
  %s4 = sld [smem:[#allocation0]]
  $region34: #{tpu_custom_call.1} parent=0
    _
  %s6 = ssub.s32 1, %s4
  %s7 = scalar_select 0, %s6, %s4
  $region1: #{tpu_custom_call.1} parent=0
    #allocation3 [shape = 'u8[32768]{0}', space=vmem, size = 0x8000, scoped, tag = 'input window, operand 0, single buffered']
    #allocation4 [shape = 's32[1]{0}', space=sflag, size = 0x4, scoped, tag = 'scoped memory for tpu_custom_call.1']
    #allocation5 [shape = 's32[1]{0}', space=sflag, size = 0x4, scoped, tag = 'scoped memory for tpu_custom_call.1']
    #allocation6 [shape = 'u8[16384]{0}', space=vmem, size = 0x4000, scoped, tag = 'input window, operand 1, single buffered']
    #allocation7 [shape = 's32[1]{0}', space=sflag, size = 0x4, scoped, tag = 'scoped memory for tpu_custom_call.1']
    #allocation8 [shape = 'u8[1024]{0}', space=vmem, size = 0x400, scoped, tag = 'output window, operand 0, single buffered']
    %8 = vsyncpa [#allocation4], 0
    %9 = vsyncpa [#allocation7], 0
    %10 = vsyncpa [#allocation5], 0
    // Predicated region
    $region2: #{tpu_custom_call.1} parent=1 // pred_check
      _
    $region3: #{tpu_custom_call.1} parent=1 // pred_check_branch
      %12 = sbr.rel (0) target = $region5
    $region4: #{tpu_custom_call.1} parent=1 // pred_region
      %s14 = ssub.s32 1024, 1024
      %15 = vsyncadd [#allocation4], %s14
      %s16 = sshll.u32 [#allocation3], 4
      %s17 = int_to_ptr.vmem [resolvable:$true] %s16
      %22 = dma.hbm_to_vmem [thread:$0]  %s0, 1024, %s17, [#allocation4], 128, 128, 8
    $region5: #{tpu_custom_call.1} parent=1 // pred_fallthru
      _
    // Predicated region
    $region6: #{tpu_custom_call.1} parent=1 // pred_check
      _
    $region7: #{tpu_custom_call.1} parent=1 // pred_check_branch
      %24 = sbr.rel (0) target = $region9
    $region8: #{tpu_custom_call.1} parent=1 // pred_region
      %s26 = ssub.s32 512, 512
      %27 = vsyncadd [#allocation7], %s26
      %s28 = sshll.u32 [#allocation6], 4
      %s29 = int_to_ptr.vmem [resolvable:$true] %s28
      %34 = dma.hbm_to_vmem [thread:$0]  %s1, 512, %s29, [#allocation7], 128, 128, 8
    $region9: #{tpu_custom_call.1} parent=1 // pred_fallthru
      _
    // Predicated region
    $region10: #{tpu_custom_call.1} parent=1 // pred_check
      _
    $region11: #{tpu_custom_call.1} parent=1 // pred_check_branch
      %36 = sbr.rel (0) target = $region13
    $region12: #{tpu_custom_call.1} parent=1 // pred_region
      _
    $region13: #{tpu_custom_call.1} parent=1 // pred_fallthru
      _
    // Predicated region
    $region14: #{tpu_custom_call.1} parent=1 // pred_check
      _
    $region15: #{tpu_custom_call.1} parent=1 // pred_check_branch
      %38 = sbr.rel (0) target = $region17
    $region16: #{tpu_custom_call.1} parent=1 // pred_region
      %39 = dma.done [#allocation4], 1024
    $region17: #{tpu_custom_call.1} parent=1 // pred_fallthru
      _
    // Predicated region
    $region18: #{tpu_custom_call.1} parent=1 // pred_check
      _
    $region19: #{tpu_custom_call.1} parent=1 // pred_check_branch
      %41 = sbr.rel (0) target = $region21
    $region20: #{tpu_custom_call.1} parent=1 // pred_region
      %42 = dma.done [#allocation7], 512
    $region21: #{tpu_custom_call.1} parent=1 // pred_fallthru
      _
    %p43 = scmp.eq.s32.totalorder 0, 0
    // Predicated region
    $region22: #{tpu_custom_call.1} parent=1 // pred_check
      %p44 = pneg %p43
    $region23: #{tpu_custom_call.1} parent=1 // pred_check_branch
      %46 = sbr.rel (%p44) target = $region25
    $region24: #{tpu_custom_call.1} parent=1 // pred_region
      %v47 = vld [vmem:[#allocation3] sm:$0xff]
      %v48 = vld [vmem:[#allocation3 + $0x8] sm:$0xff]
      %v49 = vld [vmem:[#allocation3 + $0x10] sm:$0xff]
      %v50 = vld [vmem:[#allocation3 + $0x18] sm:$0xff]
      %v51 = vld [vmem:[#allocation3 + $0x20] sm:$0xff]
      %v52 = vld [vmem:[#allocation3 + $0x28] sm:$0xff]
      %v53 = vld [vmem:[#allocation3 + $0x30] sm:$0xff]
      %v54 = vld [vmem:[#allocation3 + $0x38] sm:$0xff]
      %vm55 = vcmask 523264
      %v56 = vsel %vm55, %v47, 0.0
      %57 = vadd.xlane.f32.xlu0 %v56
      %v58 = vpop.xlane.xlu0 %57
      %v59 = vsel %vm55, %v48, 0.0
      %60 = vadd.xlane.f32.xlu0 %v59
      %v61 = vpop.xlane.xlu0 %60
      %v62 = vsel %vm55, %v49, 0.0
      %63 = vadd.xlane.f32.xlu0 %v62
      %v64 = vpop.xlane.xlu0 %63
      %v65 = vsel %vm55, %v50, 0.0
      %66 = vadd.xlane.f32.xlu0 %v65
      %v67 = vpop.xlane.xlu0 %66
      %v68 = vsel %vm55, %v51, 0.0
      %69 = vadd.xlane.f32.xlu0 %v68
      %v70 = vpop.xlane.xlu0 %69
      %v71 = vsel %vm55, %v52, 0.0
      %72 = vadd.xlane.f32.xlu0 %v71
      %v73 = vpop.xlane.xlu0 %72
      %v74 = vsel %vm55, %v53, 0.0
      %75 = vadd.xlane.f32.xlu0 %v74
      %v76 = vpop.xlane.xlu0 %75
      %v77 = vsel %vm55, %v54, 0.0
      %78 = vadd.xlane.f32.xlu0 %v77
      %v79 = vpop.xlane.xlu0 %78
      %v80 = vmul.f32 %v58, 0.015625
      %v81 = vmul.f32 %v61, 0.015625
      %v82 = vmul.f32 %v64, 0.015625
      %v83 = vmul.f32 %v67, 0.015625
      %v84 = vmul.f32 %v70, 0.015625
      %v85 = vmul.f32 %v73, 0.015625
      %v86 = vmul.f32 %v76, 0.015625
      %v87 = vmul.f32 %v79, 0.015625
      %v96 = vlaneseq
      %v97 = vand.u32 %v96, 127
      %v98 = vlaneseq
      %v99 = vshrl.u32 %v98, 7
      %v100 = vsub.s32 %v97, %v99
      %v101 = vrot.slane %v80, %v100
      %v102 = vadd.s32 %v97, 4294967288
      %v103 = vlaneseq
      %v104 = vshrl.u32 %v103, 7
      %v105 = vsub.s32 %v102, %v104
      %v106 = vrot.slane %v81, %v105
      %vm107 = vcmask 130112
      %v108 = vsel %vm107, %v106, %v101
      %v109 = vadd.s32 %v97, 4294967280
      %v110 = vlaneseq
      %v111 = vshrl.u32 %v110, 7
      %v112 = vsub.s32 %v109, %v111
      %v113 = vrot.slane %v82, %v112
      %vm114 = vcmask 195712
      %v115 = vsel %vm114, %v113, %v108
      %v116 = vadd.s32 %v97, 4294967272
      %v117 = vlaneseq
      %v118 = vshrl.u32 %v117, 7
      %v119 = vsub.s32 %v116, %v118
      %v120 = vrot.slane %v83, %v119
      %vm121 = vcmask 261312
      %v122 = vsel %vm121, %v120, %v115
      %v123 = vlaneseq
      %v124 = vshrl.u32 %v123, 7
      %v125 = vsub.s32 %v97, %v124
      %v126 = vrot.slane %v84, %v125
      %v127 = vlaneseq
      %v128 = vshrl.u32 %v127, 7
      %v129 = vsub.s32 %v102, %v128
      %v130 = vrot.slane %v85, %v129
      %v131 = vsel %vm107, %v130, %v126
      %v132 = vlaneseq
      %v133 = vshrl.u32 %v132, 7
      %v134 = vsub.s32 %v109, %v133
      %v135 = vrot.slane %v86, %v134
      %v136 = vsel %vm114, %v135, %v131
      %v137 = vlaneseq
      %v138 = vshrl.u32 %v137, 7
      %v139 = vsub.s32 %v116, %v138
      %v140 = vrot.slane %v87, %v139
      %v141 = vsel %vm121, %v140, %v136
      %vm142 = vcmask 1041409
      %v143 = vsel %vm142, %v141, %v122
      %vm145 = vcmask 254976
      %146 = vst.msk [vmem:[#allocation2] sm:$0x3] %vm145, %v143
    $region25: #{tpu_custom_call.1} parent=1 // pred_fallthru
      _
    %v147 = vld [vmem:[#allocation6] sm:$0xff]
    %v148 = vld [vmem:[#allocation6 + $0x8] sm:$0xff]
    %v149 = vld [vmem:[#allocation6 + $0x10] sm:$0xff]
    %v150 = vld [vmem:[#allocation6 + $0x18] sm:$0xff]
    %v151 = vld [vmem:[#allocation2] sm:$0x3]
    %v152 = vld [vmem:[%s2] sm:$0x1]
    %v154 = vlaneseq
    %v155 = vshrl.u32 %v154, 7
    %v156 = vsub.s32 0, %v155
    %v157 = vrot.slane %v152, %v156
    %vm159 = vcmask 261120
    %v161 = vsel %vm159, %v151, 0
    %163 = vmatprep.subr.mxu0 0.0
    %164 = vmatpush1.msra.mxu0 0.0
    %165 = vmatprep.subr.mxu0 0.0
    %166 = vmatpush1.msra.mxu0 0.0
    %167 = vmatprep.subr.mxu0 0.0
    %168 = vmatpush1.msra.mxu0 0.0
    %169 = vmatprep.subr.mxu0 0.0
    %170 = vmatpush1.msra.mxu0 0.0
    %171 = vmatprep.subr.mxu0 0.0
    %172 = vmatpush1.msra.mxu0 0.0
    %173 = vmatprep.subr.mxu0 0.0
    %174 = vmatpush1.msra.mxu0 0.0
    %175 = vmatprep.subr.mxu0 0.0
    %176 = vmatpush1.msra.mxu0 0.0
    %177 = vmatprep.subr.mxu0 0.0
    %178 = vmatpush1.msra.mxu0 0.0
    %179 = vmatprep.subr.mxu0 0.0
    %180 = vmatpush1.msra.mxu0 0.0
    %181 = vmatprep.subr.mxu0 0.0
    %182 = vmatpush1.msra.mxu0 0.0
    %183 = vmatprep.subr.mxu0 0.0
    %184 = vmatpush1.msra.mxu0 0.0
    %185 = vmatprep.subr.mxu0 0.0
    %186 = vmatpush1.msra.mxu0 0.0
    %187 = vmatprep.subr.mxu0 0.0
    %188 = vmatpush1.msra.mxu0 %v150
    %189 = vmatprep.subr.mxu0 0.0
    %190 = vmatpush1.msra.mxu0 %v149
    %191 = vmatprep.subr.mxu0 0.0
    %192 = vmatpush1.msra.mxu0 %v148
    %193 = vmatprep.subr.mxu0 0.0
    %194 = vmatpush1.msra.mxu0 %v147
    %195 = vmatprep.subr.mxu0 0.0
    %196 = vmatpush2.msra.mxu0 0.0
    %197 = vmatprep.subr.mxu0 0.0
    %198 = vmatpush2.msra.mxu0 0.0
    %199 = vmatprep.subr.mxu0 0.0
    %200 = vmatpush2.msra.mxu0 0.0
    %201 = vmatprep.subr.mxu0 0.0
    %202 = vmatpush2.msra.mxu0 0.0
    %203 = vmatprep.subr.mxu0 0.0
    %204 = vmatpush2.msra.mxu0 0.0
    %205 = vmatprep.subr.mxu0 0.0
    %206 = vmatpush2.msra.mxu0 0.0
    %207 = vmatprep.subr.mxu0 0.0
    %208 = vmatpush2.msra.mxu0 0.0
    %209 = vmatprep.subr.mxu0 0.0
    %210 = vmatpush2.msra.mxu0 0.0
    %211 = vmatprep.subr.mxu0 0.0
    %212 = vmatpush2.msra.mxu0 0.0
    %213 = vmatprep.subr.mxu0 0.0
    %214 = vmatpush2.msra.mxu0 0.0
    %215 = vmatprep.subr.mxu0 0.0
    %216 = vmatpush2.msra.mxu0 0.0
    %217 = vmatprep.subr.mxu0 0.0
    %218 = vmatpush2.msra.mxu0 0.0
    %219 = vmatprep.subr.mxu0 0.0
    %220 = vmatpush2.msra.mxu0 0.0
    %221 = vmatprep.subr.mxu0 0.0
    %222 = vmatpush2.msra.mxu0 0.0
    %223 = vmatprep.subr.mxu0 0.0
    %224 = vmatpush2.msra.mxu0 0.0
    %225 = vmatprep.subr.mxu0 0.0
    %226 = vmatpush2.msra.mxu0 0.0
    %227 = vmatprep.mubr.f32.mxu0 0.0
    %228 = vmatmul.mubr.f32.gmra.mxu0 %v161
    %v229 = vpop.f32.mrf.mxu0
    %v230 = vadd.f32 %v157, %v229
    %v231 = vpop.f32.mrf.mxu0
    %232 = vdwg.mxu0
    %233 = vst [vmem:[#allocation8] sm:$0x3] %v230
    // Predicated region
    $region26: #{tpu_custom_call.1} parent=1 // pred_check
      _
    $region27: #{tpu_custom_call.1} parent=1 // pred_check_branch
      %235 = sbr.rel (0) target = $region29
    $region28: #{tpu_custom_call.1} parent=1 // pred_region
      %s237 = ssub.s32 32, 32
      %238 = vsyncadd [#allocation5], %s237
      %s240 = sshll.u32 [#allocation8], 4
      %s241 = int_to_ptr.vmem [resolvable:$true] %s240
      %243 = dma.vmem_to_hbm [thread:$0]  %s241, 32, %s3, [#allocation5]
    $region29: #{tpu_custom_call.1} parent=1 // pred_fallthru
      _
    // Predicated region
    $region30: #{tpu_custom_call.1} parent=1 // pred_check
      _
    $region31: #{tpu_custom_call.1} parent=1 // pred_check_branch
      %245 = sbr.rel (0) target = $region33
    $region32: #{tpu_custom_call.1} parent=1 // pred_region
      %246 = dma.done [#allocation5], 32
    $region33: #{tpu_custom_call.1} parent=1 // pred_fallthru
      _
    %247 = vsyncpa [#allocation4], 1
    %248 = vsyncpa [#allocation7], 1
    %249 = vsyncpa [#allocation5], 1

</llo_original>
